<compile_context>
chip_gen: v7x
topology: tpu7x:2x2x1
jax: 0.10.0
libtpu: 0.0.40
codegen_flags: <defaults>
</compile_context>

<pallas_src>
import jax
import jax.numpy as jnp
from jax.experimental import pallas as pl
from jax.experimental.pallas import tpu as pltpu

IN_DIM = 8
HIDDEN = 256 * 4          # 1024
OUT_DIM = 7
OUT_PAD = 128             # lane-dense padded output width
NEG_LARGE = -1e30         # pad-lane bias -> exp(pad - max) == 0 exactly
DEFAULT_TB = 512          # batch tile: generation-safe (few MiB of VMEM)


def actor_kernel(x_ref, w1_ref, b1_ref, w2_ref, b2_ref, probs_ref):
    # x:  (TB, 8) f32      w1: (8, 1024) f32      b1: (1, 1024) f32
    # w2: (1024, 128) bf16 b2: (1, 128) f32       probs: (TB, 128) f32
    x = x_ref[...]
    w1 = w1_ref[...]
    tb = x.shape[0]

    # ---- Linear(8, 1024): rank-8 VPU update (K=8 would waste the MXU) ------
    h = jnp.broadcast_to(b1_ref[...], (tb, HIDDEN))
    for k in range(IN_DIM):                       # unrolled: 8 broadcast FMAs
        h = h + x[:, k:k + 1] * w1[k:k + 1, :]

    # ---- Tanh (EUP) ---------------------------------------------------------
    h = jnp.tanh(h)

    # ---- Linear(1024, 7->128 padded): bf16 MXU matmul, f32 accumulation -----
    logits = jnp.dot(h.astype(jnp.bfloat16), w2_ref[...],
                     preferred_element_type=jnp.float32) + b2_ref[...]

    # ---- Softmax(dim=-1), numerically stable; pad lanes get exactly 0 -------
    m = jnp.max(logits, axis=-1, keepdims=True)
    e = jnp.exp(logits - m)
    denom = jnp.sum(e, axis=-1, keepdims=True)
    probs_ref[...] = e * pl.reciprocal(denom, approx=False)


def _round_up(n, m):
    return ((n + m - 1) // m) * m


def actor_forward(x, w1, b1, w2, b2, *, block_b=DEFAULT_TB):
    """x: (B, 8) float32  ->  probs: (B, 7) float32."""
    B = x.shape[0]

    # Batch tile: multiple of 8 (sublane), capped at block_b; pad B to match.
    TB = min(block_b, _round_up(B, 8))
    Bp = _round_up(B, TB)
    if Bp != B:
        x = jnp.pad(x, ((0, Bp - B), (0, 0)))

    # Parameter prep: 2-D biases, lane-dense (128-wide) output padding.
    b1_2d = b1.reshape(1, HIDDEN).astype(jnp.float32)
    w2_p = jnp.pad(w2, ((0, 0), (0, OUT_PAD - OUT_DIM))).astype(jnp.bfloat16)
    b2_p = jnp.pad(b2, ((0, OUT_PAD - OUT_DIM),),
                   constant_values=NEG_LARGE).reshape(1, OUT_PAD).astype(jnp.float32)

    grid = (Bp // TB,)

    cost = pl.CostEstimate(
        flops=2 * Bp * IN_DIM * HIDDEN + 2 * Bp * HIDDEN * OUT_PAD,
        transcendentals=Bp * HIDDEN + Bp * OUT_PAD,
        bytes_accessed=(Bp * IN_DIM * 4 + IN_DIM * HIDDEN * 4 + HIDDEN * 4
                        + HIDDEN * OUT_PAD * 2 + OUT_PAD * 4 + Bp * OUT_PAD * 4),
    )

    probs_padded = pl.pallas_call(
        actor_kernel,
        out_shape=jax.ShapeDtypeStruct((Bp, OUT_PAD), jnp.float32),
        grid_spec=pltpu.PrefetchScalarGridSpec(
            num_scalar_prefetch=0,
            grid=grid,
            in_specs=[
                pl.BlockSpec((TB, IN_DIM), lambda i: (i, 0)),        # x tile
                pl.BlockSpec((IN_DIM, HIDDEN), lambda i: (0, 0)),    # w1 (resident)
                pl.BlockSpec((1, HIDDEN), lambda i: (0, 0)),         # b1 (resident)
                pl.BlockSpec((HIDDEN, OUT_PAD), lambda i: (0, 0)),   # w2 (resident)
                pl.BlockSpec((1, OUT_PAD), lambda i: (0, 0)),        # b2 (resident)
            ],
            out_specs=pl.BlockSpec((TB, OUT_PAD), lambda i: (i, 0)),
        ),
        compiler_params=pltpu.CompilerParams(
            dimension_semantics=("parallel",),   # v7x: shard batch tiles over 2 TCs
        ),
        cost_estimate=cost,
    )(x, w1, b1_2d, w2_p, b2_p)

    return probs_padded[:B, :OUT_DIM]


def init_params(key):
    """PyTorch-Linear-style uniform(-1/sqrt(fan_in), 1/sqrt(fan_in)) init."""
    k1, k2, k3, k4 = jax.random.split(key, 4)
    bound1 = 1.0 / jnp.sqrt(IN_DIM)
    bound2 = 1.0 / jnp.sqrt(HIDDEN)
    w1 = jax.random.uniform(k1, (IN_DIM, HIDDEN), jnp.float32, -bound1, bound1)
    b1 = jax.random.uniform(k2, (HIDDEN,), jnp.float32, -bound1, bound1)
    w2 = jax.random.uniform(k3, (HIDDEN, OUT_DIM), jnp.float32, -bound2, bound2)
    b2 = jax.random.uniform(k4, (OUT_DIM,), jnp.float32, -bound2, bound2)
    return w1, b1, w2, b2


def reference_forward(x, w1, b1, w2, b2):
    h = jnp.tanh(x @ w1 + b1)
    logits = h @ w2 + b2
    return jax.nn.softmax(logits, axis=-1)


if __name__ == "__main__":
    key = jax.random.PRNGKey(0)
    pkey, xkey = jax.random.split(key)

    w1, b1, w2, b2 = init_params(pkey)

    B = 2  # small batch of states, each with 8 features
    x = jax.random.normal(xkey, (B, IN_DIM), jnp.float32)

    probs = actor_forward(x, w1, b1, w2, b2)
    probs = jax.block_until_ready(probs)

    # Correctness check vs. pure-JAX f32 reference. Layer 2 runs in bf16 on the
    # MXU (f32 accumulation), so use a bf16-appropriate tolerance; the softmax
    # itself (exact reciprocal) still sums to 1 at f32 precision.
    ref = jax.block_until_ready(reference_forward(x, w1, b1, w2, b2))
    assert probs.shape == (B, OUT_DIM)
    assert jnp.allclose(jnp.sum(probs, axis=-1), 1.0, atol=1e-5)
    assert jnp.allclose(probs, ref, atol=1e-2, rtol=1e-2)
    assert jnp.all(jnp.argmax(probs, axis=-1) == jnp.argmax(ref, axis=-1))

    # TODO(synk): torch.distributions.Categorical has no Pallas equivalent;
    # the kernel returns the categorical probabilities directly.
    print("KERNEL_OK")
</pallas_src>

<mosaic_0001>
module attributes {stable_mosaic.version = 11 : i64} {
  func.func @actor_kernel(%arg0: i32, %arg1: memref<8x8xf32, #tpu.memory_space<vmem>>, %arg2: memref<8x1024xf32, #tpu.memory_space<vmem>>, %arg3: memref<1x1024xf32, #tpu.memory_space<vmem>>, %arg4: memref<1024x128xbf16, #tpu.memory_space<vmem>>, %arg5: memref<1x128xf32, #tpu.memory_space<vmem>>, %arg6: memref<8x128xf32, #tpu.memory_space<vmem>>) attributes {dimension_semantics = [#tpu.dimension_semantics<parallel>], iteration_bounds = array<i64: 1>, scalar_prefetch = 0 : i64, scratch_operands = 0 : i64, tpu.core_type = #tpu.core_type<tc>, window_params = [{transform_indices = @transform_0, window_bounds = array<i64: 8, 8>}, {pipeline_mode = #tpu.pipeline_mode<synchronous>, transform_indices = @transform_1, window_bounds = array<i64: 8, 1024>}, {pipeline_mode = #tpu.pipeline_mode<synchronous>, transform_indices = @transform_2, window_bounds = array<i64: 1, 1024>}, {pipeline_mode = #tpu.pipeline_mode<synchronous>, transform_indices = @transform_3, window_bounds = array<i64: 1024, 128>}, {pipeline_mode = #tpu.pipeline_mode<synchronous>, transform_indices = @transform_4, window_bounds = array<i64: 1, 128>}, {transform_indices = @transform_5, window_bounds = array<i64: 8, 128>}]} {
    %c0 = arith.constant 0 : index
    %c0_0 = arith.constant 0 : index
    %0 = vector.load %arg1[%c0, %c0_0] : memref<8x8xf32, #tpu.memory_space<vmem>>, vector<8x8xf32>
    %c0_1 = arith.constant 0 : index
    %c0_2 = arith.constant 0 : index
    %1 = vector.load %arg2[%c0_1, %c0_2] : memref<8x1024xf32, #tpu.memory_space<vmem>>, vector<8x1024xf32>
    %c0_3 = arith.constant 0 : index
    %c0_4 = arith.constant 0 : index
    %2 = vector.load %arg3[%c0_3, %c0_4] : memref<1x1024xf32, #tpu.memory_space<vmem>>, vector<1x1024xf32>
    %3 = vector.shape_cast %2 : vector<1x1024xf32> to vector<1x1024xf32>
    %4 = vector.broadcast %3 : vector<1x1024xf32> to vector<8x1024xf32>
    %5 = vector.extract_strided_slice %0 {offsets = [0, 0], sizes = [8, 1], strides = [1, 1]} : vector<8x8xf32> to vector<8x1xf32>
    %6 = vector.extract_strided_slice %1 {offsets = [0, 0], sizes = [1, 1024], strides = [1, 1]} : vector<8x1024xf32> to vector<1x1024xf32>
    %7 = vector.broadcast %5 : vector<8x1xf32> to vector<8x1024xf32>
    %8 = vector.broadcast %6 : vector<1x1024xf32> to vector<8x1024xf32>
    %9 = arith.mulf %7, %8 : vector<8x1024xf32>
    %10 = arith.addf %4, %9 : vector<8x1024xf32>
    %11 = vector.extract_strided_slice %0 {offsets = [0, 1], sizes = [8, 1], strides = [1, 1]} : vector<8x8xf32> to vector<8x1xf32>
    %12 = vector.extract_strided_slice %1 {offsets = [1, 0], sizes = [1, 1024], strides = [1, 1]} : vector<8x1024xf32> to vector<1x1024xf32>
    %13 = vector.broadcast %11 : vector<8x1xf32> to vector<8x1024xf32>
    %14 = vector.broadcast %12 : vector<1x1024xf32> to vector<8x1024xf32>
    %15 = arith.mulf %13, %14 : vector<8x1024xf32>
    %16 = arith.addf %10, %15 : vector<8x1024xf32>
    %17 = vector.extract_strided_slice %0 {offsets = [0, 2], sizes = [8, 1], strides = [1, 1]} : vector<8x8xf32> to vector<8x1xf32>
    %18 = vector.extract_strided_slice %1 {offsets = [2, 0], sizes = [1, 1024], strides = [1, 1]} : vector<8x1024xf32> to vector<1x1024xf32>
    %19 = vector.broadcast %17 : vector<8x1xf32> to vector<8x1024xf32>
    %20 = vector.broadcast %18 : vector<1x1024xf32> to vector<8x1024xf32>
    %21 = arith.mulf %19, %20 : vector<8x1024xf32>
    %22 = arith.addf %16, %21 : vector<8x1024xf32>
    %23 = vector.extract_strided_slice %0 {offsets = [0, 3], sizes = [8, 1], strides = [1, 1]} : vector<8x8xf32> to vector<8x1xf32>
    %24 = vector.extract_strided_slice %1 {offsets = [3, 0], sizes = [1, 1024], strides = [1, 1]} : vector<8x1024xf32> to vector<1x1024xf32>
    %25 = vector.broadcast %23 : vector<8x1xf32> to vector<8x1024xf32>
    %26 = vector.broadcast %24 : vector<1x1024xf32> to vector<8x1024xf32>
    %27 = arith.mulf %25, %26 : vector<8x1024xf32>
    %28 = arith.addf %22, %27 : vector<8x1024xf32>
    %29 = vector.extract_strided_slice %0 {offsets = [0, 4], sizes = [8, 1], strides = [1, 1]} : vector<8x8xf32> to vector<8x1xf32>
    %30 = vector.extract_strided_slice %1 {offsets = [4, 0], sizes = [1, 1024], strides = [1, 1]} : vector<8x1024xf32> to vector<1x1024xf32>
    %31 = vector.broadcast %29 : vector<8x1xf32> to vector<8x1024xf32>
    %32 = vector.broadcast %30 : vector<1x1024xf32> to vector<8x1024xf32>
    %33 = arith.mulf %31, %32 : vector<8x1024xf32>
    %34 = arith.addf %28, %33 : vector<8x1024xf32>
    %35 = vector.extract_strided_slice %0 {offsets = [0, 5], sizes = [8, 1], strides = [1, 1]} : vector<8x8xf32> to vector<8x1xf32>
    %36 = vector.extract_strided_slice %1 {offsets = [5, 0], sizes = [1, 1024], strides = [1, 1]} : vector<8x1024xf32> to vector<1x1024xf32>
    %37 = vector.broadcast %35 : vector<8x1xf32> to vector<8x1024xf32>
    %38 = vector.broadcast %36 : vector<1x1024xf32> to vector<8x1024xf32>
    %39 = arith.mulf %37, %38 : vector<8x1024xf32>
    %40 = arith.addf %34, %39 : vector<8x1024xf32>
    %41 = vector.extract_strided_slice %0 {offsets = [0, 6], sizes = [8, 1], strides = [1, 1]} : vector<8x8xf32> to vector<8x1xf32>
    %42 = vector.extract_strided_slice %1 {offsets = [6, 0], sizes = [1, 1024], strides = [1, 1]} : vector<8x1024xf32> to vector<1x1024xf32>
    %43 = vector.broadcast %41 : vector<8x1xf32> to vector<8x1024xf32>
    %44 = vector.broadcast %42 : vector<1x1024xf32> to vector<8x1024xf32>
    %45 = arith.mulf %43, %44 : vector<8x1024xf32>
    %46 = arith.addf %40, %45 : vector<8x1024xf32>
    %47 = vector.extract_strided_slice %0 {offsets = [0, 7], sizes = [8, 1], strides = [1, 1]} : vector<8x8xf32> to vector<8x1xf32>
    %48 = vector.extract_strided_slice %1 {offsets = [7, 0], sizes = [1, 1024], strides = [1, 1]} : vector<8x1024xf32> to vector<1x1024xf32>
    %49 = vector.broadcast %47 : vector<8x1xf32> to vector<8x1024xf32>
    %50 = vector.broadcast %48 : vector<1x1024xf32> to vector<8x1024xf32>
    %51 = arith.mulf %49, %50 : vector<8x1024xf32>
    %52 = arith.addf %46, %51 : vector<8x1024xf32>
    %53 = math.tanh %52 : vector<8x1024xf32>
    %54 = arith.truncf %53 : vector<8x1024xf32> to vector<8x1024xbf16>
    %c0_5 = arith.constant 0 : index
    %c0_6 = arith.constant 0 : index
    %55 = vector.load %arg4[%c0_5, %c0_6] : memref<1024x128xbf16, #tpu.memory_space<vmem>>, vector<1024x128xbf16>
    %cst = arith.constant dense<0.000000e+00> : vector<8x128xf32>
    %56 = tpu.matmul %54, %55, %cst {dimension_numbers = #tpu.dot_dimension_numbers<[1], [0], [0], [1], [0, 0, 1, 1], [], []>} : vector<8x1024xbf16>, vector<1024x128xbf16>, vector<8x128xf32> -> vector<8x128xf32>
    %c0_7 = arith.constant 0 : index
    %c0_8 = arith.constant 0 : index
    %57 = vector.load %arg5[%c0_7, %c0_8] : memref<1x128xf32, #tpu.memory_space<vmem>>, vector<1x128xf32>
    %58 = vector.broadcast %57 : vector<1x128xf32> to vector<8x128xf32>
    %59 = arith.addf %56, %58 : vector<8x128xf32>
    %cst_9 = arith.constant dense<0xFF800000> : vector<8xf32>
    %60 = vector.multi_reduction <maximumf>, %59, %cst_9 [1] : vector<8x128xf32> to vector<8xf32>
    %61 = vector.shape_cast %60 : vector<8xf32> to vector<8x1xf32>
    %62 = vector.broadcast %61 : vector<8x1xf32> to vector<8x128xf32>
    %63 = arith.subf %59, %62 : vector<8x128xf32>
    %64 = math.exp %63 : vector<8x128xf32>
    %cst_10 = arith.constant dense<0.000000e+00> : vector<8xf32>
    %65 = vector.multi_reduction <add>, %64, %cst_10 [1] : vector<8x128xf32> to vector<8xf32>
    %66 = vector.shape_cast %65 : vector<8xf32> to vector<8x1xf32>
    %67 = tpu.reciprocal %66 : vector<8x1xf32> -> vector<8x1xf32>
    %68 = vector.broadcast %67 : vector<8x1xf32> to vector<8x128xf32>
    %69 = arith.mulf %64, %68 : vector<8x128xf32>
    %c0_11 = arith.constant 0 : index
    %c0_12 = arith.constant 0 : index
    %70 = vector.load %arg6[%c0_11, %c0_12] : memref<8x128xf32, #tpu.memory_space<vmem>>, vector<8x128xf32>
    tpu.vector_store %arg6[%c0_11, %c0_12], %69 {strides = array<i32>} : memref<8x128xf32, #tpu.memory_space<vmem>>, vector<8x128xf32>,
    return
  }
  func.func @transform_0(%arg0: i32) -> (i32, i32) {
    %c0_i32 = arith.constant 0 : i32
    %c0_i32_0 = arith.constant 0 : i32
    return %arg0, %c0_i32 : i32, i32
  }
  func.func @transform_1(%arg0: i32) -> (i32, i32) {
    %c0_i32 = arith.constant 0 : i32
    %c0_i32_0 = arith.constant 0 : i32
    %c0_i32_1 = arith.constant 0 : i32
    return %c0_i32, %c0_i32_0 : i32, i32
  }
  func.func @transform_2(%arg0: i32) -> (i32, i32) {
    %c0_i32 = arith.constant 0 : i32
    %c0_i32_0 = arith.constant 0 : i32
    %c0_i32_1 = arith.constant 0 : i32
    return %c0_i32, %c0_i32_0 : i32, i32
  }
  func.func @transform_3(%arg0: i32) -> (i32, i32) {
    %c0_i32 = arith.constant 0 : i32
    %c0_i32_0 = arith.constant 0 : i32
    %c0_i32_1 = arith.constant 0 : i32
    return %c0_i32, %c0_i32_0 : i32, i32
  }
  func.func @transform_4(%arg0: i32) -> (i32, i32) {
    %c0_i32 = arith.constant 0 : i32
    %c0_i32_0 = arith.constant 0 : i32
    %c0_i32_1 = arith.constant 0 : i32
    return %c0_i32, %c0_i32_0 : i32, i32
  }
  func.func @transform_5(%arg0: i32) -> (i32, i32) {
    %c0_i32 = arith.constant 0 : i32
    %c0_i32_0 = arith.constant 0 : i32
    return %arg0, %c0_i32 : i32, i32
  }
}

</mosaic_0001>

<llo_original>
// kernel: tpu_custom_call.1
$region0: #{tpu_custom_call.1}
  #allocation0 [shape = 'u32[]', space=smem, size = 0x4, offset = 0x4, fixed_abs, tag = 'smem constant byte address 0x4 - core index']
  #allocation1 [shape = 'u32[144,128]{1,0:T(1,128)}', space=vmem, size = 0x12000, scoped, tag = 'internal scratch']
  %s0 = inlined_call_operand.hbm [shape: f32[8,8], index: 0, kind: input, shape index: {}]
  %s1 = inlined_call_operand.hbm [shape: f32[8,1024], index: 1, kind: input, shape index: {}]
  %s2 = inlined_call_operand.hbm [shape: f32[1,1024], index: 2, kind: input, shape index: {}]
  %s3 = inlined_call_operand.hbm [shape: bf16[1024,128], index: 3, kind: input, shape index: {}]
  %s4 = inlined_call_operand.vmem [shape: f32[1,128], index: 4, kind: input, shape index: {}]
  %s5 = inlined_call_operand.hbm [shape: f32[8,128], index: 5, kind: output, shape index: {}]
  %s6 = sld [smem:[#allocation0]]
  $region46: #{tpu_custom_call.1} parent=0
    _
  %s8 = ssub.s32 1, %s6
  %s9 = scalar_select 0, %s8, %s6
  $region1: #{tpu_custom_call.1} parent=0
    #allocation2 [shape = 'u8[4096]{0}', space=vmem, size = 0x1000, scoped, tag = 'input window, operand 0, single buffered']
    #allocation3 [shape = 's32[1]{0}', space=sflag, size = 0x4, scoped, tag = 'scoped memory for tpu_custom_call.1']
    #allocation4 [shape = 's32[1]{0}', space=sflag, size = 0x4, scoped, tag = 'scoped memory for tpu_custom_call.1']
    #allocation5 [shape = 'u8[32768]{0}', space=vmem, size = 0x8000, scoped, tag = 'input window, operand 1, single buffered']
    #allocation6 [shape = 's32[1]{0}', space=sflag, size = 0x4, scoped, tag = 'scoped memory for tpu_custom_call.1']
    #allocation7 [shape = 'u8[4096]{0}', space=vmem, size = 0x1000, scoped, tag = 'input window, operand 2, single buffered']
    #allocation8 [shape = 'u8[262144]{0}', space=vmem, size = 0x40000, scoped, tag = 'input window, operand 3, single buffered']
    #allocation9 [shape = 's32[1]{0}', space=sflag, size = 0x4, scoped, tag = 'scoped memory for tpu_custom_call.1']
    #allocation10 [shape = 'u8[4096]{0}', space=vmem, size = 0x1000, scoped, tag = 'output window, operand 0, single buffered']
    %10 = vsyncpa [#allocation3], 0
    %11 = vsyncpa [#allocation6], 0
    %12 = vsyncpa [#allocation9], 0
    %13 = vsyncpa [#allocation4], 0
    // Predicated region
    $region2: #{tpu_custom_call.1} parent=1 // pred_check
      _
    $region3: #{tpu_custom_call.1} parent=1 // pred_check_branch
      %15 = sbr.rel (0) target = $region5
    $region4: #{tpu_custom_call.1} parent=1 // pred_region
      %s17 = ssub.s32 128, 128
      %18 = vsyncadd [#allocation3], %s17
      %s20 = sshll.u32 [#allocation2], 4
      %s21 = int_to_ptr.vmem [resolvable:$true] %s20
      %23 = dma.hbm_to_vmem [thread:$0]  %s0, 128, %s21, [#allocation3]
    $region5: #{tpu_custom_call.1} parent=1 // pred_fallthru
      _
    // Predicated region
    $region6: #{tpu_custom_call.1} parent=1 // pred_check
      _
    $region7: #{tpu_custom_call.1} parent=1 // pred_check_branch
      %25 = sbr.rel (0) target = $region9
    $region8: #{tpu_custom_call.1} parent=1 // pred_region
      %s27 = ssub.s32 1024, 1024
      %28 = vsyncadd [#allocation6], %s27
      %s30 = sshll.u32 [#allocation5], 4
      %s31 = int_to_ptr.vmem [resolvable:$true] %s30
      %33 = dma.hbm_to_vmem [thread:$0]  %s1, 1024, %s31, [#allocation6]
    $region9: #{tpu_custom_call.1} parent=1 // pred_fallthru
      _
    // Predicated region
    $region10: #{tpu_custom_call.1} parent=1 // pred_check
      _
    $region11: #{tpu_custom_call.1} parent=1 // pred_check_branch
      %35 = sbr.rel (0) target = $region13
    $region12: #{tpu_custom_call.1} parent=1 // pred_region
      %s37 = ssub.s32 128, 128
      %38 = vsyncadd [#allocation6], %s37
      %s40 = sshll.u32 [#allocation7], 4
      %s41 = int_to_ptr.vmem [resolvable:$true] %s40
      %43 = dma.hbm_to_vmem [thread:$0]  %s2, 128, %s41, [#allocation6]
    $region13: #{tpu_custom_call.1} parent=1 // pred_fallthru
      _
    // Predicated region
    $region14: #{tpu_custom_call.1} parent=1 // pred_check
      _
    $region15: #{tpu_custom_call.1} parent=1 // pred_check_branch
      %45 = sbr.rel (0) target = $region17
    $region16: #{tpu_custom_call.1} parent=1 // pred_region
      %s47 = ssub.s32 8192, 8192
      %48 = vsyncadd [#allocation9], %s47
      %s49 = sshll.u32 [#allocation8], 4
      %s50 = int_to_ptr.vmem [resolvable:$true] %s49
      %55 = dma.hbm_to_vmem [thread:$0]  %s3, 8192, %s50, [#allocation9], 64, 64, 4
    $region17: #{tpu_custom_call.1} parent=1 // pred_fallthru
      _
    // Predicated region
    $region18: #{tpu_custom_call.1} parent=1 // pred_check
      _
    $region19: #{tpu_custom_call.1} parent=1 // pred_check_branch
      %57 = sbr.rel (0) target = $region21
    $region20: #{tpu_custom_call.1} parent=1 // pred_region
      _
    $region21: #{tpu_custom_call.1} parent=1 // pred_fallthru
      _
    // Predicated region
    $region22: #{tpu_custom_call.1} parent=1 // pred_check
      _
    $region23: #{tpu_custom_call.1} parent=1 // pred_check_branch
      %59 = sbr.rel (0) target = $region25
    $region24: #{tpu_custom_call.1} parent=1 // pred_region
      %60 = dma.done [#allocation3], 128
    $region25: #{tpu_custom_call.1} parent=1 // pred_fallthru
      _
    // Predicated region
    $region26: #{tpu_custom_call.1} parent=1 // pred_check
      _
    $region27: #{tpu_custom_call.1} parent=1 // pred_check_branch
      %62 = sbr.rel (0) target = $region29
    $region28: #{tpu_custom_call.1} parent=1 // pred_region
      %63 = dma.done [#allocation6], 1024
    $region29: #{tpu_custom_call.1} parent=1 // pred_fallthru
      _
    // Predicated region
    $region30: #{tpu_custom_call.1} parent=1 // pred_check
      _
    $region31: #{tpu_custom_call.1} parent=1 // pred_check_branch
      %65 = sbr.rel (0) target = $region33
    $region32: #{tpu_custom_call.1} parent=1 // pred_region
      %66 = dma.done [#allocation6], 128
    $region33: #{tpu_custom_call.1} parent=1 // pred_fallthru
      _
    // Predicated region
    $region34: #{tpu_custom_call.1} parent=1 // pred_check
      _
    $region35: #{tpu_custom_call.1} parent=1 // pred_check_branch
      %68 = sbr.rel (0) target = $region37
    $region36: #{tpu_custom_call.1} parent=1 // pred_region
      %69 = dma.done [#allocation9], 8192
    $region37: #{tpu_custom_call.1} parent=1 // pred_fallthru
      _
    %v71 = vld [vmem:[#allocation2] sm:$0xff]
    %v72 = vld [vmem:[#allocation5] sm:$0xff]
    %v73 = vld [vmem:[#allocation5 + $0x8] sm:$0xff]
    %v74 = vld [vmem:[#allocation5 + $0x10] sm:$0xff]
    %v75 = vld [vmem:[#allocation5 + $0x18] sm:$0xff]
    %v76 = vld [vmem:[#allocation5 + $0x20] sm:$0xff]
    %v77 = vld [vmem:[#allocation5 + $0x28] sm:$0xff]
    %v78 = vld [vmem:[#allocation5 + $0x30] sm:$0xff]
    %v79 = vld [vmem:[#allocation5 + $0x38] sm:$0xff]
    %v80 = vld [vmem:[#allocation7] sm:$0xff]
    %v82 = vlaneseq
    %v83 = vshrl.u32 %v82, 7
    %v84 = vsub.s32 0, %v83
    %v85 = vrot.slane %v80, %v84
    %v86 = vlaneseq
    %v87 = vshrl.u32 %v86, 7
    %v88 = vsub.s32 1, %v87
    %v89 = vrot.slane %v80, %v88
    %v90 = vlaneseq
    %v91 = vshrl.u32 %v90, 7
    %v92 = vsub.s32 2, %v91
    %v93 = vrot.slane %v80, %v92
    %v94 = vlaneseq
    %v95 = vshrl.u32 %v94, 7
    %v96 = vsub.s32 3, %v95
    %v97 = vrot.slane %v80, %v96
    %v98 = vlaneseq
    %v99 = vshrl.u32 %v98, 7
    %v100 = vsub.s32 4, %v99
    %v101 = vrot.slane %v80, %v100
    %v102 = vlaneseq
    %v103 = vshrl.u32 %v102, 7
    %v104 = vsub.s32 5, %v103
    %v105 = vrot.slane %v80, %v104
    %v106 = vlaneseq
    %v107 = vshrl.u32 %v106, 7
    %v108 = vsub.s32 6, %v107
    %v109 = vrot.slane %v80, %v108
    %v110 = vlaneseq
    %v111 = vshrl.u32 %v110, 7
    %v112 = vsub.s32 7, %v111
    %v113 = vrot.slane %v80, %v112
    %123 = vset.pattern.permute.xlu0 0
    %124 = vperm.xlu0 %123, %v71
    %v125 = vpop.permute.xlu0 %124
    %v127 = vlaneseq
    %v128 = vshrl.u32 %v127, 7
    %v129 = vsub.s32 0, %v128
    %v130 = vrot.slane %v72, %v129
    %v131 = vlaneseq
    %v132 = vshrl.u32 %v131, 7
    %v133 = vsub.s32 0, %v132
    %v134 = vrot.slane %v73, %v133
    %v135 = vlaneseq
    %v136 = vshrl.u32 %v135, 7
    %v137 = vsub.s32 0, %v136
    %v138 = vrot.slane %v74, %v137
    %v139 = vlaneseq
    %v140 = vshrl.u32 %v139, 7
    %v141 = vsub.s32 0, %v140
    %v142 = vrot.slane %v75, %v141
    %v143 = vlaneseq
    %v144 = vshrl.u32 %v143, 7
    %v145 = vsub.s32 0, %v144
    %v146 = vrot.slane %v76, %v145
    %v147 = vlaneseq
    %v148 = vshrl.u32 %v147, 7
    %v149 = vsub.s32 0, %v148
    %v150 = vrot.slane %v77, %v149
    %v151 = vlaneseq
    %v152 = vshrl.u32 %v151, 7
    %v153 = vsub.s32 0, %v152
    %v154 = vrot.slane %v78, %v153
    %v155 = vlaneseq
    %v156 = vshrl.u32 %v155, 7
    %v157 = vsub.s32 0, %v156
    %v158 = vrot.slane %v79, %v157
    %v159 = vmul.f32 %v125, %v130
    %v160 = vmul.f32 %v125, %v134
    %v161 = vmul.f32 %v125, %v138
    %v162 = vmul.f32 %v125, %v142
    %v163 = vmul.f32 %v125, %v146
    %v164 = vmul.f32 %v125, %v150
    %v165 = vmul.f32 %v125, %v154
    %v166 = vmul.f32 %v125, %v158
    %v167 = vadd.f32 %v85, %v159
    %v168 = vadd.f32 %v89, %v160
    %v169 = vadd.f32 %v93, %v161
    %v170 = vadd.f32 %v97, %v162
    %v171 = vadd.f32 %v101, %v163
    %v172 = vadd.f32 %v105, %v164
    %v173 = vadd.f32 %v109, %v165
    %v174 = vadd.f32 %v113, %v166
    %175 = vset.pattern.permute.xlu0 1
    %176 = vperm.xlu0 %175, %v71
    %v177 = vpop.permute.xlu0 %176
    %v179 = vlaneseq
    %v180 = vshrl.u32 %v179, 7
    %v181 = vsub.s32 1, %v180
    %v182 = vrot.slane %v72, %v181
    %v183 = vlaneseq
    %v184 = vshrl.u32 %v183, 7
    %v185 = vsub.s32 1, %v184
    %v186 = vrot.slane %v73, %v185
    %v187 = vlaneseq
    %v188 = vshrl.u32 %v187, 7
    %v189 = vsub.s32 1, %v188
    %v190 = vrot.slane %v74, %v189
    %v191 = vlaneseq
    %v192 = vshrl.u32 %v191, 7
    %v193 = vsub.s32 1, %v192
    %v194 = vrot.slane %v75, %v193
    %v195 = vlaneseq
    %v196 = vshrl.u32 %v195, 7
    %v197 = vsub.s32 1, %v196
    %v198 = vrot.slane %v76, %v197
    %v199 = vlaneseq
    %v200 = vshrl.u32 %v199, 7
    %v201 = vsub.s32 1, %v200
    %v202 = vrot.slane %v77, %v201
    %v203 = vlaneseq
    %v204 = vshrl.u32 %v203, 7
    %v205 = vsub.s32 1, %v204
    %v206 = vrot.slane %v78, %v205
    %v207 = vlaneseq
    %v208 = vshrl.u32 %v207, 7
    %v209 = vsub.s32 1, %v208
    %v210 = vrot.slane %v79, %v209
    %v211 = vmul.f32 %v177, %v182
    %v212 = vmul.f32 %v177, %v186
    %v213 = vmul.f32 %v177, %v190
    %v214 = vmul.f32 %v177, %v194
    %v215 = vmul.f32 %v177, %v198
    %v216 = vmul.f32 %v177, %v202
    %v217 = vmul.f32 %v177, %v206
    %v218 = vmul.f32 %v177, %v210
    %v219 = vadd.f32 %v167, %v211
    %v220 = vadd.f32 %v168, %v212
    %v221 = vadd.f32 %v169, %v213
    %v222 = vadd.f32 %v170, %v214
    %v223 = vadd.f32 %v171, %v215
    %v224 = vadd.f32 %v172, %v216
    %v225 = vadd.f32 %v173, %v217
    %v226 = vadd.f32 %v174, %v218
    %227 = vset.pattern.permute.xlu0 2
    %228 = vperm.xlu0 %227, %v71
    %v229 = vpop.permute.xlu0 %228
    %v231 = vlaneseq
    %v232 = vshrl.u32 %v231, 7
    %v233 = vsub.s32 2, %v232
    %v234 = vrot.slane %v72, %v233
    %v235 = vlaneseq
    %v236 = vshrl.u32 %v235, 7
    %v237 = vsub.s32 2, %v236
    %v238 = vrot.slane %v73, %v237
    %v239 = vlaneseq
    %v240 = vshrl.u32 %v239, 7
    %v241 = vsub.s32 2, %v240
    %v242 = vrot.slane %v74, %v241
    %v243 = vlaneseq
    %v244 = vshrl.u32 %v243, 7
    %v245 = vsub.s32 2, %v244
    %v246 = vrot.slane %v75, %v245
    %v247 = vlaneseq
    %v248 = vshrl.u32 %v247, 7
    %v249 = vsub.s32 2, %v248
    %v250 = vrot.slane %v76, %v249
    %v251 = vlaneseq
    %v252 = vshrl.u32 %v251, 7
    %v253 = vsub.s32 2, %v252
    %v254 = vrot.slane %v77, %v253
    %v255 = vlaneseq
    %v256 = vshrl.u32 %v255, 7
    %v257 = vsub.s32 2, %v256
    %v258 = vrot.slane %v78, %v257
    %v259 = vlaneseq
    %v260 = vshrl.u32 %v259, 7
    %v261 = vsub.s32 2, %v260
    %v262 = vrot.slane %v79, %v261
    %v263 = vmul.f32 %v229, %v234
    %v264 = vmul.f32 %v229, %v238
    %v265 = vmul.f32 %v229, %v242
    %v266 = vmul.f32 %v229, %v246
    %v267 = vmul.f32 %v229, %v250
    %v268 = vmul.f32 %v229, %v254
    %v269 = vmul.f32 %v229, %v258
    %v270 = vmul.f32 %v229, %v262
    %v271 = vadd.f32 %v219, %v263
    %v272 = vadd.f32 %v220, %v264
    %v273 = vadd.f32 %v221, %v265
    %v274 = vadd.f32 %v222, %v266
    %v275 = vadd.f32 %v223, %v267
    %v276 = vadd.f32 %v224, %v268
    %v277 = vadd.f32 %v225, %v269
    %v278 = vadd.f32 %v226, %v270
    %279 = vset.pattern.permute.xlu0 3
    %280 = vperm.xlu0 %279, %v71
    %v281 = vpop.permute.xlu0 %280
    %v283 = vlaneseq
    %v284 = vshrl.u32 %v283, 7
    %v285 = vsub.s32 3, %v284
    %v286 = vrot.slane %v72, %v285
    %v287 = vlaneseq
    %v288 = vshrl.u32 %v287, 7
    %v289 = vsub.s32 3, %v288
    %v290 = vrot.slane %v73, %v289
    %v291 = vlaneseq
    %v292 = vshrl.u32 %v291, 7
    %v293 = vsub.s32 3, %v292
    %v294 = vrot.slane %v74, %v293
    %v295 = vlaneseq
    %v296 = vshrl.u32 %v295, 7
    %v297 = vsub.s32 3, %v296
    %v298 = vrot.slane %v75, %v297
    %v299 = vlaneseq
    %v300 = vshrl.u32 %v299, 7
    %v301 = vsub.s32 3, %v300
    %v302 = vrot.slane %v76, %v301
    %v303 = vlaneseq
    %v304 = vshrl.u32 %v303, 7
    %v305 = vsub.s32 3, %v304
    %v306 = vrot.slane %v77, %v305
    %v307 = vlaneseq
    %v308 = vshrl.u32 %v307, 7
    %v309 = vsub.s32 3, %v308
    %v310 = vrot.slane %v78, %v309
    %v311 = vlaneseq
    %v312 = vshrl.u32 %v311, 7
    %v313 = vsub.s32 3, %v312
    %v314 = vrot.slane %v79, %v313
    %v315 = vmul.f32 %v281, %v286
    %v316 = vmul.f32 %v281, %v290
    %v317 = vmul.f32 %v281, %v294
    %v318 = vmul.f32 %v281, %v298
    %v319 = vmul.f32 %v281, %v302
    %v320 = vmul.f32 %v281, %v306
    %v321 = vmul.f32 %v281, %v310
    %v322 = vmul.f32 %v281, %v314
    %v323 = vadd.f32 %v271, %v315
    %v324 = vadd.f32 %v272, %v316
    %v325 = vadd.f32 %v273, %v317
    %v326 = vadd.f32 %v274, %v318
    %v327 = vadd.f32 %v275, %v319
    %v328 = vadd.f32 %v276, %v320
    %v329 = vadd.f32 %v277, %v321
    %v330 = vadd.f32 %v278, %v322
    %331 = vset.pattern.permute.xlu0 4
    %332 = vperm.xlu0 %331, %v71
    %v333 = vpop.permute.xlu0 %332
    %v335 = vlaneseq
    %v336 = vshrl.u32 %v335, 7
    %v337 = vsub.s32 4, %v336
    %v338 = vrot.slane %v72, %v337
    %v339 = vlaneseq
    %v340 = vshrl.u32 %v339, 7
    %v341 = vsub.s32 4, %v340
    %v342 = vrot.slane %v73, %v341
    %v343 = vlaneseq
    %v344 = vshrl.u32 %v343, 7
    %v345 = vsub.s32 4, %v344
    %v346 = vrot.slane %v74, %v345
    %v347 = vlaneseq
    %v348 = vshrl.u32 %v347, 7
    %v349 = vsub.s32 4, %v348
    %v350 = vrot.slane %v75, %v349
    %v351 = vlaneseq
    %v352 = vshrl.u32 %v351, 7
    %v353 = vsub.s32 4, %v352
    %v354 = vrot.slane %v76, %v353
    %v355 = vlaneseq
    %v356 = vshrl.u32 %v355, 7
    %v357 = vsub.s32 4, %v356
    %v358 = vrot.slane %v77, %v357
    %v359 = vlaneseq
    %v360 = vshrl.u32 %v359, 7
    %v361 = vsub.s32 4, %v360
    %v362 = vrot.slane %v78, %v361
    %v363 = vlaneseq
    %v364 = vshrl.u32 %v363, 7
    %v365 = vsub.s32 4, %v364
    %v366 = vrot.slane %v79, %v365
    %v367 = vmul.f32 %v333, %v338
    %v368 = vmul.f32 %v333, %v342
    %v369 = vmul.f32 %v333, %v346
    %v370 = vmul.f32 %v333, %v350
    %v371 = vmul.f32 %v333, %v354
    %v372 = vmul.f32 %v333, %v358
    %v373 = vmul.f32 %v333, %v362
    %v374 = vmul.f32 %v333, %v366
    %v375 = vadd.f32 %v323, %v367
    %v376 = vadd.f32 %v324, %v368
    %v377 = vadd.f32 %v325, %v369
    %v378 = vadd.f32 %v326, %v370
    %v379 = vadd.f32 %v327, %v371
    %v380 = vadd.f32 %v328, %v372
    %v381 = vadd.f32 %v329, %v373
    %v382 = vadd.f32 %v330, %v374
    %383 = vset.pattern.permute.xlu0 5
    %384 = vperm.xlu0 %383, %v71
    %v385 = vpop.permute.xlu0 %384
    %v387 = vlaneseq
    %v388 = vshrl.u32 %v387, 7
    %v389 = vsub.s32 5, %v388
    %v390 = vrot.slane %v72, %v389
    %v391 = vlaneseq
    %v392 = vshrl.u32 %v391, 7
    %v393 = vsub.s32 5, %v392
    %v394 = vrot.slane %v73, %v393
    %v395 = vlaneseq
    %v396 = vshrl.u32 %v395, 7
    %v397 = vsub.s32 5, %v396
    %v398 = vrot.slane %v74, %v397
    %v399 = vlaneseq
    %v400 = vshrl.u32 %v399, 7
    %v401 = vsub.s32 5, %v400
    %v402 = vrot.slane %v75, %v401
    %v403 = vlaneseq
    %v404 = vshrl.u32 %v403, 7
    %v405 = vsub.s32 5, %v404
    %v406 = vrot.slane %v76, %v405
    %v407 = vlaneseq
    %v408 = vshrl.u32 %v407, 7
    %v409 = vsub.s32 5, %v408
    %v410 = vrot.slane %v77, %v409
    %v411 = vlaneseq
    %v412 = vshrl.u32 %v411, 7
    %v413 = vsub.s32 5, %v412
    %v414 = vrot.slane %v78, %v413
    %v415 = vlaneseq
    %v416 = vshrl.u32 %v415, 7
    %v417 = vsub.s32 5, %v416
    %v418 = vrot.slane %v79, %v417
    %v419 = vmul.f32 %v385, %v390
    %v420 = vmul.f32 %v385, %v394
    %v421 = vmul.f32 %v385, %v398
    %v422 = vmul.f32 %v385, %v402
    %v423 = vmul.f32 %v385, %v406
    %v424 = vmul.f32 %v385, %v410
    %v425 = vmul.f32 %v385, %v414
    %v426 = vmul.f32 %v385, %v418
    %v427 = vadd.f32 %v375, %v419
    %v428 = vadd.f32 %v376, %v420
    %v429 = vadd.f32 %v377, %v421
    %v430 = vadd.f32 %v378, %v422
    %v431 = vadd.f32 %v379, %v423
    %v432 = vadd.f32 %v380, %v424
    %v433 = vadd.f32 %v381, %v425
    %v434 = vadd.f32 %v382, %v426
    %435 = vset.pattern.permute.xlu0 6
    %436 = vperm.xlu0 %435, %v71
    %v437 = vpop.permute.xlu0 %436
    %v439 = vlaneseq
    %v440 = vshrl.u32 %v439, 7
    %v441 = vsub.s32 6, %v440
    %v442 = vrot.slane %v72, %v441
    %v443 = vlaneseq
    %v444 = vshrl.u32 %v443, 7
    %v445 = vsub.s32 6, %v444
    %v446 = vrot.slane %v73, %v445
    %v447 = vlaneseq
    %v448 = vshrl.u32 %v447, 7
    %v449 = vsub.s32 6, %v448
    %v450 = vrot.slane %v74, %v449
    %v451 = vlaneseq
    %v452 = vshrl.u32 %v451, 7
    %v453 = vsub.s32 6, %v452
    %v454 = vrot.slane %v75, %v453
    %v455 = vlaneseq
    %v456 = vshrl.u32 %v455, 7
    %v457 = vsub.s32 6, %v456
    %v458 = vrot.slane %v76, %v457
    %v459 = vlaneseq
    %v460 = vshrl.u32 %v459, 7
    %v461 = vsub.s32 6, %v460
    %v462 = vrot.slane %v77, %v461
    %v463 = vlaneseq
    %v464 = vshrl.u32 %v463, 7
    %v465 = vsub.s32 6, %v464
    %v466 = vrot.slane %v78, %v465
    %v467 = vlaneseq
    %v468 = vshrl.u32 %v467, 7
    %v469 = vsub.s32 6, %v468
    %v470 = vrot.slane %v79, %v469
    %v471 = vmul.f32 %v437, %v442
    %v472 = vmul.f32 %v437, %v446
    %v473 = vmul.f32 %v437, %v450
    %v474 = vmul.f32 %v437, %v454
    %v475 = vmul.f32 %v437, %v458
    %v476 = vmul.f32 %v437, %v462
    %v477 = vmul.f32 %v437, %v466
    %v478 = vmul.f32 %v437, %v470
    %v479 = vadd.f32 %v427, %v471
    %v480 = vadd.f32 %v428, %v472
    %v481 = vadd.f32 %v429, %v473
    %v482 = vadd.f32 %v430, %v474
    %v483 = vadd.f32 %v431, %v475
    %v484 = vadd.f32 %v432, %v476
    %v485 = vadd.f32 %v433, %v477
    %v486 = vadd.f32 %v434, %v478
    %487 = vset.pattern.permute.xlu0 7
    %488 = vperm.xlu0 %487, %v71
    %v489 = vpop.permute.xlu0 %488
    %v491 = vlaneseq
    %v492 = vshrl.u32 %v491, 7
    %v493 = vsub.s32 7, %v492
    %v494 = vrot.slane %v72, %v493
    %v495 = vlaneseq
    %v496 = vshrl.u32 %v495, 7
    %v497 = vsub.s32 7, %v496
    %v498 = vrot.slane %v73, %v497
    %v499 = vlaneseq
    %v500 = vshrl.u32 %v499, 7
    %v501 = vsub.s32 7, %v500
    %v502 = vrot.slane %v74, %v501
    %v503 = vlaneseq
    %v504 = vshrl.u32 %v503, 7
    %v505 = vsub.s32 7, %v504
    %v506 = vrot.slane %v75, %v505
    %v507 = vlaneseq
    %v508 = vshrl.u32 %v507, 7
    %v509 = vsub.s32 7, %v508
    %v510 = vrot.slane %v76, %v509
    %v511 = vlaneseq
    %v512 = vshrl.u32 %v511, 7
    %v513 = vsub.s32 7, %v512
    %v514 = vrot.slane %v77, %v513
    %v515 = vlaneseq
    %v516 = vshrl.u32 %v515, 7
    %v517 = vsub.s32 7, %v516
    %v518 = vrot.slane %v78, %v517
    %v519 = vlaneseq
    %v520 = vshrl.u32 %v519, 7
    %v521 = vsub.s32 7, %v520
    %v522 = vrot.slane %v79, %v521
    %v523 = vmul.f32 %v489, %v494
    %v524 = vmul.f32 %v489, %v498
    %v525 = vmul.f32 %v489, %v502
    %v526 = vmul.f32 %v489, %v506
    %v527 = vmul.f32 %v489, %v510
    %v528 = vmul.f32 %v489, %v514
    %v529 = vmul.f32 %v489, %v518
    %v530 = vmul.f32 %v489, %v522
    %v531 = vadd.f32 %v479, %v523
    %v532 = vadd.f32 %v480, %v524
    %v533 = vadd.f32 %v481, %v525
    %v534 = vadd.f32 %v482, %v526
    %v535 = vadd.f32 %v483, %v527
    %v536 = vadd.f32 %v484, %v528
    %v537 = vadd.f32 %v485, %v529
    %v538 = vadd.f32 %v486, %v530
    %v539 = vtanh.pop %v531
    %v540 = vtanh.pop %v532
    %v541 = vtanh.pop %v533
    %v542 = vtanh.pop %v534
    %v543 = vtanh.pop %v535
    %v544 = vtanh.pop %v536
    %v545 = vtanh.pop %v537
    %v546 = vtanh.pop %v538
    %v547 = vpack.c.bf16 %v539, %v539
    %v548 = vpack.c.bf16 %v540, %v540
    %v549 = vpack.c.bf16 %v541, %v541
    %v550 = vpack.c.bf16 %v542, %v542
    %v551 = vpack.c.bf16 %v543, %v543
    %v552 = vpack.c.bf16 %v544, %v544
    %v553 = vpack.c.bf16 %v545, %v545
    %v554 = vpack.c.bf16 %v546, %v546
    %v555 = vld [vmem:[#allocation8] sm:$0xf]
    %v556 = vld [vmem:[#allocation8 + $0x4] sm:$0xf]
    %v557 = vld [vmem:[#allocation8 + $0x8] sm:$0xf]
    %v558 = vld [vmem:[#allocation8 + $0xc] sm:$0xf]
    %v559 = vld [vmem:[#allocation8 + $0x10] sm:$0xf]
    %v560 = vld [vmem:[#allocation8 + $0x14] sm:$0xf]
    %v561 = vld [vmem:[#allocation8 + $0x18] sm:$0xf]
    %v562 = vld [vmem:[#allocation8 + $0x1c] sm:$0xf]
    %v563 = vld [vmem:[#allocation8 + $0x20] sm:$0xf]
    %v564 = vld [vmem:[#allocation8 + $0x24] sm:$0xf]
    %v565 = vld [vmem:[#allocation8 + $0x28] sm:$0xf]
    %v566 = vld [vmem:[#allocation8 + $0x2c] sm:$0xf]
    %v567 = vld [vmem:[#allocation8 + $0x30] sm:$0xf]
    %v568 = vld [vmem:[#allocation8 + $0x34] sm:$0xf]
    %v569 = vld [vmem:[#allocation8 + $0x38] sm:$0xf]
    %v570 = vld [vmem:[#allocation8 + $0x3c] sm:$0xf]
    %v571 = vld [vmem:[#allocation8 + $0x40] sm:$0xf]
    %v572 = vld [vmem:[#allocation8 + $0x44] sm:$0xf]
    %v573 = vld [vmem:[#allocation8 + $0x48] sm:$0xf]
    %v574 = vld [vmem:[#allocation8 + $0x4c] sm:$0xf]
    %v575 = vld [vmem:[#allocation8 + $0x50] sm:$0xf]
    %v576 = vld [vmem:[#allocation8 + $0x54] sm:$0xf]
    %v577 = vld [vmem:[#allocation8 + $0x58] sm:$0xf]
    %v578 = vld [vmem:[#allocation8 + $0x5c] sm:$0xf]
    %v579 = vld [vmem:[#allocation8 + $0x60] sm:$0xf]
    %v580 = vld [vmem:[#allocation8 + $0x64] sm:$0xf]
    %v581 = vld [vmem:[#allocation8 + $0x68] sm:$0xf]
    %v582 = vld [vmem:[#allocation8 + $0x6c] sm:$0xf]
    %v583 = vld [vmem:[#allocation8 + $0x70] sm:$0xf]
    %v584 = vld [vmem:[#allocation8 + $0x74] sm:$0xf]
    %v585 = vld [vmem:[#allocation8 + $0x78] sm:$0xf]
    %v586 = vld [vmem:[#allocation8 + $0x7c] sm:$0xf]
    %v587 = vld [vmem:[#allocation8 + $0x80] sm:$0xf]
    %v588 = vld [vmem:[#allocation8 + $0x84] sm:$0xf]
    %v589 = vld [vmem:[#allocation8 + $0x88] sm:$0xf]
    %v590 = vld [vmem:[#allocation8 + $0x8c] sm:$0xf]
    %v591 = vld [vmem:[#allocation8 + $0x90] sm:$0xf]
    %v592 = vld [vmem:[#allocation8 + $0x94] sm:$0xf]
    %v593 = vld [vmem:[#allocation8 + $0x98] sm:$0xf]
    %v594 = vld [vmem:[#allocation8 + $0x9c] sm:$0xf]
    %v595 = vld [vmem:[#allocation8 + $0xa0] sm:$0xf]
    %v596 = vld [vmem:[#allocation8 + $0xa4] sm:$0xf]
    %v597 = vld [vmem:[#allocation8 + $0xa8] sm:$0xf]
    %v598 = vld [vmem:[#allocation8 + $0xac] sm:$0xf]
    %v599 = vld [vmem:[#allocation8 + $0xb0] sm:$0xf]
    %v600 = vld [vmem:[#allocation8 + $0xb4] sm:$0xf]
    %v601 = vld [vmem:[#allocation8 + $0xb8] sm:$0xf]
    %v602 = vld [vmem:[#allocation8 + $0xbc] sm:$0xf]
    %v603 = vld [vmem:[#allocation8 + $0xc0] sm:$0xf]
    %v604 = vld [vmem:[#allocation8 + $0xc4] sm:$0xf]
    %v605 = vld [vmem:[#allocation8 + $0xc8] sm:$0xf]
    %v606 = vld [vmem:[#allocation8 + $0xcc] sm:$0xf]
    %v607 = vld [vmem:[#allocation8 + $0xd0] sm:$0xf]
    %v608 = vld [vmem:[#allocation8 + $0xd4] sm:$0xf]
    %v609 = vld [vmem:[#allocation8 + $0xd8] sm:$0xf]
    %v610 = vld [vmem:[#allocation8 + $0xdc] sm:$0xf]
    %v611 = vld [vmem:[#allocation8 + $0xe0] sm:$0xf]
    %v612 = vld [vmem:[#allocation8 + $0xe4] sm:$0xf]
    %v613 = vld [vmem:[#allocation8 + $0xe8] sm:$0xf]
    %v614 = vld [vmem:[#allocation8 + $0xec] sm:$0xf]
    %v615 = vld [vmem:[#allocation8 + $0xf0] sm:$0xf]
    %v616 = vld [vmem:[#allocation8 + $0xf4] sm:$0xf]
    %v617 = vld [vmem:[#allocation8 + $0xf8] sm:$0xf]
    %v618 = vld [vmem:[#allocation8 + $0xfc] sm:$0xf]
    %v619 = vld [vmem:[#allocation8 + $0x100] sm:$0xf]
    %v620 = vld [vmem:[#allocation8 + $0x104] sm:$0xf]
    %v621 = vld [vmem:[#allocation8 + $0x108] sm:$0xf]
    %v622 = vld [vmem:[#allocation8 + $0x10c] sm:$0xf]
    %v623 = vld [vmem:[#allocation8 + $0x110] sm:$0xf]
    %v624 = vld [vmem:[#allocation8 + $0x114] sm:$0xf]
    %v625 = vld [vmem:[#allocation8 + $0x118] sm:$0xf]
    %v626 = vld [vmem:[#allocation8 + $0x11c] sm:$0xf]
    %v627 = vld [vmem:[#allocation8 + $0x120] sm:$0xf]
    %v628 = vld [vmem:[#allocation8 + $0x124] sm:$0xf]
    %v629 = vld [vmem:[#allocation8 + $0x128] sm:$0xf]
    %v630 = vld [vmem:[#allocation8 + $0x12c] sm:$0xf]
    %v631 = vld [vmem:[#allocation8 + $0x130] sm:$0xf]
    %v632 = vld [vmem:[#allocation8 + $0x134] sm:$0xf]
    %v633 = vld [vmem:[#allocation8 + $0x138] sm:$0xf]
    %v634 = vld [vmem:[#allocation8 + $0x13c] sm:$0xf]
    %v635 = vld [vmem:[#allocation8 + $0x140] sm:$0xf]
    %v636 = vld [vmem:[#allocation8 + $0x144] sm:$0xf]
    %v637 = vld [vmem:[#allocation8 + $0x148] sm:$0xf]
    %v638 = vld [vmem:[#allocation8 + $0x14c] sm:$0xf]
    %v639 = vld [vmem:[#allocation8 + $0x150] sm:$0xf]
    %v640 = vld [vmem:[#allocation8 + $0x154] sm:$0xf]
    %v641 = vld [vmem:[#allocation8 + $0x158] sm:$0xf]
    %v642 = vld [vmem:[#allocation8 + $0x15c] sm:$0xf]
    %v643 = vld [vmem:[#allocation8 + $0x160] sm:$0xf]
    %v644 = vld [vmem:[#allocation8 + $0x164] sm:$0xf]
    %v645 = vld [vmem:[#allocation8 + $0x168] sm:$0xf]
    %v646 = vld [vmem:[#allocation8 + $0x16c] sm:$0xf]
    %v647 = vld [vmem:[#allocation8 + $0x170] sm:$0xf]
    %v648 = vld [vmem:[#allocation8 + $0x174] sm:$0xf]
    %v649 = vld [vmem:[#allocation8 + $0x178] sm:$0xf]
    %v650 = vld [vmem:[#allocation8 + $0x17c] sm:$0xf]
    %v651 = vld [vmem:[#allocation8 + $0x180] sm:$0xf]
    %v652 = vld [vmem:[#allocation8 + $0x184] sm:$0xf]
    %v653 = vld [vmem:[#allocation8 + $0x188] sm:$0xf]
    %v654 = vld [vmem:[#allocation8 + $0x18c] sm:$0xf]
    %v655 = vld [vmem:[#allocation8 + $0x190] sm:$0xf]
    %v656 = vld [vmem:[#allocation8 + $0x194] sm:$0xf]
    %v657 = vld [vmem:[#allocation8 + $0x198] sm:$0xf]
    %v658 = vld [vmem:[#allocation8 + $0x19c] sm:$0xf]
    %v659 = vld [vmem:[#allocation8 + $0x1a0] sm:$0xf]
    %v660 = vld [vmem:[#allocation8 + $0x1a4] sm:$0xf]
    %v661 = vld [vmem:[#allocation8 + $0x1a8] sm:$0xf]
    %v662 = vld [vmem:[#allocation8 + $0x1ac] sm:$0xf]
    %v663 = vld [vmem:[#allocation8 + $0x1b0] sm:$0xf]
    %v664 = vld [vmem:[#allocation8 + $0x1b4] sm:$0xf]
    %v665 = vld [vmem:[#allocation8 + $0x1b8] sm:$0xf]
    %v666 = vld [vmem:[#allocation8 + $0x1bc] sm:$0xf]
    %v667 = vld [vmem:[#allocation8 + $0x1c0] sm:$0xf]
    %v668 = vld [vmem:[#allocation8 + $0x1c4] sm:$0xf]
    %v669 = vld [vmem:[#allocation8 + $0x1c8] sm:$0xf]
    %v670 = vld [vmem:[#allocation8 + $0x1cc] sm:$0xf]
    %v671 = vld [vmem:[#allocation8 + $0x1d0] sm:$0xf]
    %v672 = vld [vmem:[#allocation8 + $0x1d4] sm:$0xf]
    %v673 = vld [vmem:[#allocation8 + $0x1d8] sm:$0xf]
    %v674 = vld [vmem:[#allocation8 + $0x1dc] sm:$0xf]
    %v675 = vld [vmem:[#allocation8 + $0x1e0] sm:$0xf]
    %v676 = vld [vmem:[#allocation8 + $0x1e4] sm:$0xf]
    %v677 = vld [vmem:[#allocation8 + $0x1e8] sm:$0xf]
    %v678 = vld [vmem:[#allocation8 + $0x1ec] sm:$0xf]
    %v679 = vld [vmem:[#allocation8 + $0x1f0] sm:$0xf]
    %v680 = vld [vmem:[#allocation8 + $0x1f4] sm:$0xf]
    %v681 = vld [vmem:[#allocation8 + $0x1f8] sm:$0xf]
    %v682 = vld [vmem:[#allocation8 + $0x1fc] sm:$0xf]
    %v683 = vld [vmem:[%s4] sm:$0x1]
    %v685 = vlaneseq
    %v686 = vshrl.u32 %v685, 7
    %v687 = vsub.s32 0, %v686
    %v688 = vrot.slane %v683, %v687
    %v818 = vunpack.c.l.b16 %v555
    %v819 = vunpack.c.l.b16 %v556
    %v820 = vunpack.c.l.b16 %v557
    %v821 = vunpack.c.l.b16 %v558
    %v822 = vunpack.c.l.b16 %v559
    %v823 = vunpack.c.l.b16 %v560
    %v824 = vunpack.c.l.b16 %v561
    %v825 = vunpack.c.l.b16 %v562
    %v826 = vunpack.c.l.b16 %v563
    %v827 = vunpack.c.l.b16 %v564
    %v828 = vunpack.c.l.b16 %v565
    %v829 = vunpack.c.l.b16 %v566
    %v830 = vunpack.c.l.b16 %v567
    %v831 = vunpack.c.l.b16 %v568
    %v832 = vunpack.c.l.b16 %v569
    %v833 = vunpack.c.l.b16 %v570
    %v834 = vunpack.c.l.b16 %v571
    %v835 = vunpack.c.l.b16 %v572
    %v836 = vunpack.c.l.b16 %v573
    %v837 = vunpack.c.l.b16 %v574
    %v838 = vunpack.c.l.b16 %v575
    %v839 = vunpack.c.l.b16 %v576
    %v840 = vunpack.c.l.b16 %v577
    %v841 = vunpack.c.l.b16 %v578
    %v842 = vunpack.c.l.b16 %v579
    %v843 = vunpack.c.l.b16 %v580
    %v844 = vunpack.c.l.b16 %v581
    %v845 = vunpack.c.l.b16 %v582
    %v846 = vunpack.c.l.b16 %v583
    %v847 = vunpack.c.l.b16 %v584
    %v848 = vunpack.c.l.b16 %v585
    %v849 = vunpack.c.l.b16 %v586
    %v850 = vunpack.c.l.b16 %v587
    %v851 = vunpack.c.l.b16 %v588
    %v852 = vunpack.c.l.b16 %v589
    %v853 = vunpack.c.l.b16 %v590
    %v854 = vunpack.c.l.b16 %v591
    %v855 = vunpack.c.l.b16 %v592
    %v856 = vunpack.c.l.b16 %v593
    %v857 = vunpack.c.l.b16 %v594
    %v858 = vunpack.c.l.b16 %v595
    %v859 = vunpack.c.l.b16 %v596
    %v860 = vunpack.c.l.b16 %v597
    %v861 = vunpack.c.l.b16 %v598
    %v862 = vunpack.c.l.b16 %v599
    %v863 = vunpack.c.l.b16 %v600
    %v864 = vunpack.c.l.b16 %v601
    %v865 = vunpack.c.l.b16 %v602
    %v866 = vunpack.c.l.b16 %v603
    %v867 = vunpack.c.l.b16 %v604
    %v868 = vunpack.c.l.b16 %v605
    %v869 = vunpack.c.l.b16 %v606
    %v870 = vunpack.c.l.b16 %v607
    %v871 = vunpack.c.l.b16 %v608
    %v872 = vunpack.c.l.b16 %v609
    %v873 = vunpack.c.l.b16 %v610
    %v874 = vunpack.c.l.b16 %v611
    %v875 = vunpack.c.l.b16 %v612
    %v876 = vunpack.c.l.b16 %v613
    %v877 = vunpack.c.l.b16 %v614
    %v878 = vunpack.c.l.b16 %v615
    %v879 = vunpack.c.l.b16 %v616
    %v880 = vunpack.c.l.b16 %v617
    %v881 = vunpack.c.l.b16 %v618
    %v882 = vunpack.c.l.b16 %v619
    %v883 = vunpack.c.l.b16 %v620
    %v884 = vunpack.c.l.b16 %v621
    %v885 = vunpack.c.l.b16 %v622
    %v886 = vunpack.c.l.b16 %v623
    %v887 = vunpack.c.l.b16 %v624
    %v888 = vunpack.c.l.b16 %v625
    %v889 = vunpack.c.l.b16 %v626
    %v890 = vunpack.c.l.b16 %v627
    %v891 = vunpack.c.l.b16 %v628
    %v892 = vunpack.c.l.b16 %v629
    %v893 = vunpack.c.l.b16 %v630
    %v894 = vunpack.c.l.b16 %v631
    %v895 = vunpack.c.l.b16 %v632
    %v896 = vunpack.c.l.b16 %v633
    %v897 = vunpack.c.l.b16 %v634
    %v898 = vunpack.c.l.b16 %v635
    %v899 = vunpack.c.l.b16 %v636
    %v900 = vunpack.c.l.b16 %v637
    %v901 = vunpack.c.l.b16 %v638
    %v902 = vunpack.c.l.b16 %v639
    %v903 = vunpack.c.l.b16 %v640
    %v904 = vunpack.c.l.b16 %v641
    %v905 = vunpack.c.l.b16 %v642
    %v906 = vunpack.c.l.b16 %v643
    %v907 = vunpack.c.l.b16 %v644
    %v908 = vunpack.c.l.b16 %v645
    %v909 = vunpack.c.l.b16 %v646
    %v910 = vunpack.c.l.b16 %v647
    %v911 = vunpack.c.l.b16 %v648
    %v912 = vunpack.c.l.b16 %v649
    %v913 = vunpack.c.l.b16 %v650
    %v914 = vunpack.c.l.b16 %v651
    %v915 = vunpack.c.l.b16 %v652
    %v916 = vunpack.c.l.b16 %v653
    %v917 = vunpack.c.l.b16 %v654
    %v918 = vunpack.c.l.b16 %v655
    %v919 = vunpack.c.l.b16 %v656
    %v920 = vunpack.c.l.b16 %v657
    %v921 = vunpack.c.l.b16 %v658
    %v922 = vunpack.c.l.b16 %v659
    %v923 = vunpack.c.l.b16 %v660
    %v924 = vunpack.c.l.b16 %v661
    %v925 = vunpack.c.l.b16 %v662
    %v926 = vunpack.c.l.b16 %v663
    %v927 = vunpack.c.l.b16 %v664
    %v928 = vunpack.c.l.b16 %v665
    %v929 = vunpack.c.l.b16 %v666
    %v930 = vunpack.c.l.b16 %v667
    %v931 = vunpack.c.l.b16 %v668
    %v932 = vunpack.c.l.b16 %v669
    %v933 = vunpack.c.l.b16 %v670
    %v934 = vunpack.c.l.b16 %v671
    %v935 = vunpack.c.l.b16 %v672
    %v936 = vunpack.c.l.b16 %v673
    %v937 = vunpack.c.l.b16 %v674
    %v938 = vunpack.c.l.b16 %v675
    %v939 = vunpack.c.l.b16 %v676
    %v940 = vunpack.c.l.b16 %v677
    %v941 = vunpack.c.l.b16 %v678
    %v942 = vunpack.c.l.b16 %v679
    %v943 = vunpack.c.l.b16 %v680
    %v944 = vunpack.c.l.b16 %v681
    %v945 = vunpack.c.l.b16 %v682
    %v946 = vpack.c.b16 %v819, %v818
    %v947 = vpack.c.b16 %v821, %v820
    %v948 = vpack.c.b16 %v823, %v822
    %v949 = vpack.c.b16 %v825, %v824
    %v950 = vpack.c.b16 %v827, %v826
    %v951 = vpack.c.b16 %v829, %v828
    %v952 = vpack.c.b16 %v831, %v830
    %v953 = vpack.c.b16 %v833, %v832
    %v954 = vpack.c.b16 %v835, %v834
    %v955 = vpack.c.b16 %v837, %v836
    %v956 = vpack.c.b16 %v839, %v838
    %v957 = vpack.c.b16 %v841, %v840
    %v958 = vpack.c.b16 %v843, %v842
    %v959 = vpack.c.b16 %v845, %v844
    %v960 = vpack.c.b16 %v847, %v846
    %v961 = vpack.c.b16 %v849, %v848
    %v962 = vpack.c.b16 %v851, %v850
    %v963 = vpack.c.b16 %v853, %v852
    %v964 = vpack.c.b16 %v855, %v854
    %v965 = vpack.c.b16 %v857, %v856
    %v966 = vpack.c.b16 %v859, %v858
    %v967 = vpack.c.b16 %v861, %v860
    %v968 = vpack.c.b16 %v863, %v862
    %v969 = vpack.c.b16 %v865, %v864
    %v970 = vpack.c.b16 %v867, %v866
    %v971 = vpack.c.b16 %v869, %v868
    %v972 = vpack.c.b16 %v871, %v870
    %v973 = vpack.c.b16 %v873, %v872
    %v974 = vpack.c.b16 %v875, %v874
    %v975 = vpack.c.b16 %v877, %v876
    %v976 = vpack.c.b16 %v879, %v878
    %v977 = vpack.c.b16 %v881, %v880
    %v978 = vpack.c.b16 %v883, %v882
    %v979 = vpack.c.b16 %v885, %v884
    %v980 = vpack.c.b16 %v887, %v886
    %v981 = vpack.c.b16 %v889, %v888
    %v982 = vpack.c.b16 %v891, %v890
    %v983 = vpack.c.b16 %v893, %v892
    %v984 = vpack.c.b16 %v895, %v894
    %v985 = vpack.c.b16 %v897, %v896
    %v986 = vpack.c.b16 %v899, %v898
    %v987 = vpack.c.b16 %v901, %v900
    %v988 = vpack.c.b16 %v903, %v902
    %v989 = vpack.c.b16 %v905, %v904
    %v990 = vpack.c.b16 %v907, %v906
    %v991 = vpack.c.b16 %v909, %v908
    %v992 = vpack.c.b16 %v911, %v910
    %v993 = vpack.c.b16 %v913, %v912
    %v994 = vpack.c.b16 %v915, %v914
    %v995 = vpack.c.b16 %v917, %v916
    %v996 = vpack.c.b16 %v919, %v918
    %v997 = vpack.c.b16 %v921, %v920
    %v998 = vpack.c.b16 %v923, %v922
    %v999 = vpack.c.b16 %v925, %v924
    %v1000 = vpack.c.b16 %v927, %v926
    %v1001 = vpack.c.b16 %v929, %v928
    %v1002 = vpack.c.b16 %v931, %v930
    %v1003 = vpack.c.b16 %v933, %v932
    %v1004 = vpack.c.b16 %v935, %v934
    %v1005 = vpack.c.b16 %v937, %v936
    %v1006 = vpack.c.b16 %v939, %v938
    %v1007 = vpack.c.b16 %v941, %v940
    %v1008 = vpack.c.b16 %v943, %v942
    %v1009 = vpack.c.b16 %v945, %v944
    %1074 = vmatprep.subr.bf16.mxu0 0
    %1075 = vmatpush1.bf16.msra.mxu0 %v946
    %1076 = vmatprep.subr.bf16.mxu0 0
    %1077 = vmatpush1.bf16.msra.mxu0 %v947
    %1078 = vmatprep.subr.bf16.mxu0 0
    %1079 = vmatpush1.bf16.msra.mxu0 %v948
    %1080 = vmatprep.subr.bf16.mxu0 0
    %1081 = vmatpush1.bf16.msra.mxu0 %v949
    %1082 = vmatprep.subr.bf16.mxu0 0
    %1083 = vmatpush1.bf16.msra.mxu0 %v950
    %1084 = vmatprep.subr.bf16.mxu0 0
    %1085 = vmatpush1.bf16.msra.mxu0 %v951
    %1086 = vmatprep.subr.bf16.mxu0 0
    %1087 = vmatpush1.bf16.msra.mxu0 %v952
    %1088 = vmatprep.subr.bf16.mxu0 0
    %1089 = vmatpush1.bf16.msra.mxu0 %v953
    %1090 = vmatprep.subr.bf16.mxu0 0
    %1091 = vmatpush1.bf16.msra.mxu0 %v954
    %1092 = vmatprep.subr.bf16.mxu0 0
    %1093 = vmatpush1.bf16.msra.mxu0 %v955
    %1094 = vmatprep.subr.bf16.mxu0 0
    %1095 = vmatpush1.bf16.msra.mxu0 %v956
    %1096 = vmatprep.subr.bf16.mxu0 0
    %1097 = vmatpush1.bf16.msra.mxu0 %v957
    %1098 = vmatprep.subr.bf16.mxu0 0
    %1099 = vmatpush1.bf16.msra.mxu0 %v958
    %1100 = vmatprep.subr.bf16.mxu0 0
    %1101 = vmatpush1.bf16.msra.mxu0 %v959
    %1102 = vmatprep.subr.bf16.mxu0 0
    %1103 = vmatpush1.bf16.msra.mxu0 %v960
    %1104 = vmatprep.subr.bf16.mxu0 0
    %1105 = vmatpush1.bf16.msra.mxu0 %v961
    %1106 = vmatprep.mubr.bf16.mxu0 %v548
    %1107 = vmatmul.mubr.bf16.gmra.mrb[0].mxu0 %v547
    %v1108 = vpop.f32.mrb[0].mxu0
    %v1109 = vadd.f32 %v688, %v1108
    %v1110 = vpop.f32.mrb[0].mxu0
    %v1111 = vpop.f32.mrb[0].mxu0
    %v1112 = vpop.f32.mrb[0].mxu0
    %1113 = vdwg.mxu0
    %1114 = vmatprep.subr.bf16.mxu0 0
    %1115 = vmatpush1.bf16.msra.mxu0 %v962
    %1116 = vmatprep.subr.bf16.mxu0 0
    %1117 = vmatpush1.bf16.msra.mxu0 %v963
    %1118 = vmatprep.subr.bf16.mxu0 0
    %1119 = vmatpush1.bf16.msra.mxu0 %v964
    %1120 = vmatprep.subr.bf16.mxu0 0
    %1121 = vmatpush1.bf16.msra.mxu0 %v965
    %1122 = vmatprep.subr.bf16.mxu0 0
    %1123 = vmatpush1.bf16.msra.mxu0 %v966
    %1124 = vmatprep.subr.bf16.mxu0 0
    %1125 = vmatpush1.bf16.msra.mxu0 %v967
    %1126 = vmatprep.subr.bf16.mxu0 0
    %1127 = vmatpush1.bf16.msra.mxu0 %v968
    %1128 = vmatprep.subr.bf16.mxu0 0
    %1129 = vmatpush1.bf16.msra.mxu0 %v969
    %1130 = vmatprep.subr.bf16.mxu0 0
    %1131 = vmatpush1.bf16.msra.mxu0 %v970
    %1132 = vmatprep.subr.bf16.mxu0 0
    %1133 = vmatpush1.bf16.msra.mxu0 %v971
    %1134 = vmatprep.subr.bf16.mxu0 0
    %1135 = vmatpush1.bf16.msra.mxu0 %v972
    %1136 = vmatprep.subr.bf16.mxu0 0
    %1137 = vmatpush1.bf16.msra.mxu0 %v973
    %1138 = vmatprep.subr.bf16.mxu0 0
    %1139 = vmatpush1.bf16.msra.mxu0 %v974
    %1140 = vmatprep.subr.bf16.mxu0 0
    %1141 = vmatpush1.bf16.msra.mxu0 %v975
    %1142 = vmatprep.subr.bf16.mxu0 0
    %1143 = vmatpush1.bf16.msra.mxu0 %v976
    %1144 = vmatprep.subr.bf16.mxu0 0
    %1145 = vmatpush1.bf16.msra.mxu0 %v977
    %1146 = vmatprep.mubr.bf16.mxu0 %v550
    %1147 = vmatmul.mubr.bf16.gmra.mrb[0].mxu0 %v549
    %v1148 = vpop.f32.mrb[0].mxu0
    %v1149 = vadd.f32 %v1109, %v1148
    %v1150 = vpop.f32.mrb[0].mxu0
    %v1151 = vpop.f32.mrb[0].mxu0
    %v1152 = vpop.f32.mrb[0].mxu0
    %1153 = vdwg.mxu0
    %1154 = vmatprep.subr.bf16.mxu0 0
    %1155 = vmatpush1.bf16.msra.mxu0 %v978
    %1156 = vmatprep.subr.bf16.mxu0 0
    %1157 = vmatpush1.bf16.msra.mxu0 %v979
    %1158 = vmatprep.subr.bf16.mxu0 0
    %1159 = vmatpush1.bf16.msra.mxu0 %v980
    %1160 = vmatprep.subr.bf16.mxu0 0
    %1161 = vmatpush1.bf16.msra.mxu0 %v981
    %1162 = vmatprep.subr.bf16.mxu0 0
    %1163 = vmatpush1.bf16.msra.mxu0 %v982
    %1164 = vmatprep.subr.bf16.mxu0 0
    %1165 = vmatpush1.bf16.msra.mxu0 %v983
    %1166 = vmatprep.subr.bf16.mxu0 0
    %1167 = vmatpush1.bf16.msra.mxu0 %v984
    %1168 = vmatprep.subr.bf16.mxu0 0
    %1169 = vmatpush1.bf16.msra.mxu0 %v985
    %1170 = vmatprep.subr.bf16.mxu0 0
    %1171 = vmatpush1.bf16.msra.mxu0 %v986
    %1172 = vmatprep.subr.bf16.mxu0 0
    %1173 = vmatpush1.bf16.msra.mxu0 %v987
    %1174 = vmatprep.subr.bf16.mxu0 0
    %1175 = vmatpush1.bf16.msra.mxu0 %v988
    %1176 = vmatprep.subr.bf16.mxu0 0
    %1177 = vmatpush1.bf16.msra.mxu0 %v989
    %1178 = vmatprep.subr.bf16.mxu0 0
    %1179 = vmatpush1.bf16.msra.mxu0 %v990
    %1180 = vmatprep.subr.bf16.mxu0 0
    %1181 = vmatpush1.bf16.msra.mxu0 %v991
    %1182 = vmatprep.subr.bf16.mxu0 0
    %1183 = vmatpush1.bf16.msra.mxu0 %v992
    %1184 = vmatprep.subr.bf16.mxu0 0
    %1185 = vmatpush1.bf16.msra.mxu0 %v993
    %1186 = vmatprep.mubr.bf16.mxu0 %v552
    %1187 = vmatmul.mubr.bf16.gmra.mrb[0].mxu0 %v551
    %v1188 = vpop.f32.mrb[0].mxu0
    %v1189 = vadd.f32 %v1149, %v1188
    %v1190 = vpop.f32.mrb[0].mxu0
    %v1191 = vpop.f32.mrb[0].mxu0
    %v1192 = vpop.f32.mrb[0].mxu0
    %1193 = vdwg.mxu0
    %1194 = vmatprep.subr.bf16.mxu0 0
    %1195 = vmatpush1.bf16.msra.mxu0 %v994
    %1196 = vmatprep.subr.bf16.mxu0 0
    %1197 = vmatpush1.bf16.msra.mxu0 %v995
    %1198 = vmatprep.subr.bf16.mxu0 0
    %1199 = vmatpush1.bf16.msra.mxu0 %v996
    %1200 = vmatprep.subr.bf16.mxu0 0
    %1201 = vmatpush1.bf16.msra.mxu0 %v997
    %1202 = vmatprep.subr.bf16.mxu0 0
    %1203 = vmatpush1.bf16.msra.mxu0 %v998
    %1204 = vmatprep.subr.bf16.mxu0 0
    %1205 = vmatpush1.bf16.msra.mxu0 %v999
    %1206 = vmatprep.subr.bf16.mxu0 0
    %1207 = vmatpush1.bf16.msra.mxu0 %v1000
    %1208 = vmatprep.subr.bf16.mxu0 0
    %1209 = vmatpush1.bf16.msra.mxu0 %v1001
    %1210 = vmatprep.subr.bf16.mxu0 0
    %1211 = vmatpush1.bf16.msra.mxu0 %v1002
    %1212 = vmatprep.subr.bf16.mxu0 0
    %1213 = vmatpush1.bf16.msra.mxu0 %v1003
    %1214 = vmatprep.subr.bf16.mxu0 0
    %1215 = vmatpush1.bf16.msra.mxu0 %v1004
    %1216 = vmatprep.subr.bf16.mxu0 0
    %1217 = vmatpush1.bf16.msra.mxu0 %v1005
    %1218 = vmatprep.subr.bf16.mxu0 0
    %1219 = vmatpush1.bf16.msra.mxu0 %v1006
    %1220 = vmatprep.subr.bf16.mxu0 0
    %1221 = vmatpush1.bf16.msra.mxu0 %v1007
    %1222 = vmatprep.subr.bf16.mxu0 0
    %1223 = vmatpush1.bf16.msra.mxu0 %v1008
    %1224 = vmatprep.subr.bf16.mxu0 0
    %1225 = vmatpush1.bf16.msra.mxu0 %v1009
    %1226 = vmatprep.mubr.bf16.mxu0 %v554
    %1227 = vmatmul.mubr.bf16.gmra.mrb[0].mxu0 %v553
    %v1228 = vpop.f32.mrb[0].mxu0
    %v1229 = vadd.f32 %v1189, %v1228
    %v1230 = vpop.f32.mrb[0].mxu0
    %v1231 = vpop.f32.mrb[0].mxu0
    %v1232 = vpop.f32.mrb[0].mxu0
    %1233 = vdwg.mxu0
    %1234 = vmax.xlane.f32.xlu0 %v1229
    %v1235 = vpop.xlane.xlu0 %1234
    %v1236 = vsub.f32 %v1229, %v1235
    %v1237 = vmul.f32 %v1236, 1.442695
    %v1238 = vpow.pop %v1237
    %1239 = vadd.xlane.f32.xlu0 %v1238
    %v1240 = vpop.xlane.xlu0 %1239
    %v1241 = vrcp.pop %v1240
    %v1242 = vmul.f32 %v1238, %v1241
    %1243 = vst [vmem:[#allocation10] sm:$0xff] %v1242
    // Predicated region
    $region38: #{tpu_custom_call.1} parent=1 // pred_check
      _
    $region39: #{tpu_custom_call.1} parent=1 // pred_check_branch
      %1245 = sbr.rel (0) target = $region41
    $region40: #{tpu_custom_call.1} parent=1 // pred_region
      %s1247 = ssub.s32 128, 128
      %1248 = vsyncadd [#allocation4], %s1247
      %s1250 = sshll.u32 [#allocation10], 4
      %s1251 = int_to_ptr.vmem [resolvable:$true] %s1250
      %1253 = dma.vmem_to_hbm [thread:$0]  %s1251, 128, %s5, [#allocation4]
    $region41: #{tpu_custom_call.1} parent=1 // pred_fallthru
      _
    // Predicated region
    $region42: #{tpu_custom_call.1} parent=1 // pred_check
      _
    $region43: #{tpu_custom_call.1} parent=1 // pred_check_branch
      %1255 = sbr.rel (0) target = $region45
    $region44: #{tpu_custom_call.1} parent=1 // pred_region
      %1256 = dma.done [#allocation4], 128
    $region45: #{tpu_custom_call.1} parent=1 // pred_fallthru
      _
    %1257 = vsyncpa [#allocation3], 1
    %1258 = vsyncpa [#allocation6], 1
    %1259 = vsyncpa [#allocation9], 1
    %1260 = vsyncpa [#allocation4], 1

</llo_original>
